<compile_context>
chip_gen: v7x
topology: tpu7x:2x2x1
jax: 0.10.0
libtpu: 0.0.40
codegen_flags: <defaults>
</compile_context>

<pallas_src>
import functools

import jax
import jax.numpy as jnp
from jax.experimental import pallas as pl
from jax.experimental.pallas import tpu as pltpu

NEG_SLOPE = 0.01
BN_EPS = 1e-5


def _round_up(n, m):
    return ((n + m - 1) // m) * m


def _pick_batch_tile(batch, block_b):
    """Batch tile: whole batch if it fits one tile, else {512,256,128} minimizing waste."""
    if batch <= block_b:
        return batch  # block dim equal to the full array dim is always legal
    candidates = [c for c in (512, 256, 128) if c <= block_b] or [128]
    # minimize padded waste; break ties toward the larger tile
    return min(candidates, key=lambda c: (pl.cdiv(batch, c) * c - batch, -c))


def _classifier_kernel(x_ref, w1_ref, scale_ref, shift_ref, w2_ref, b2_ref, o_ref,
                       *, ew_dtype):
    # LeakyReLU on the raw input tile (dropout is identity in eval mode).
    # ew_dtype = bf16 on v6e/v7x (native bf16 VPU), f32 on v5e / exact path.
    x = x_ref[...].astype(ew_dtype)
    h = jnp.where(x > 0, x, jnp.asarray(NEG_SLOPE, ew_dtype) * x).astype(w1_ref.dtype)

    # Linear1 on the MXU with f32 accumulation; BatchNorm (+ Linear1 bias) applied
    # as an f32 affine epilogue: hb = (h @ W1) * scale + shift.
    h1 = jnp.dot(h, w1_ref[...], preferred_element_type=jnp.float32)
    hb = h1 * scale_ref[...] + shift_ref[...]

    # Second LeakyReLU in f32, cast for the second MXU pass.
    h2 = jnp.where(hb > 0, hb, NEG_SLOPE * hb).astype(w2_ref.dtype)

    # Linear2 -> lane-dense f32 store (output lane dim is a 128 multiple).
    o_ref[...] = (jnp.dot(h2, w2_ref[...], preferred_element_type=jnp.float32)
                  + b2_ref[...]).astype(o_ref.dtype)


def prepare_params(params, *, use_bf16=True):
    """One-time fold/pad/cast of the module parameters (do NOT re-run per forward).

    Returns lane-padded tensors:
      w1:    (C, H_pad)   weight dtype (bf16 or f32), raw W1 (BN scale NOT folded in)
      scale: (1, H_pad)   f32  = gamma / sqrt(var + eps)
      shift: (1, H_pad)   f32  = b1*scale + beta - mean*scale
      w2:    (H_pad, O_pad) weight dtype
      b2:    (1, O_pad)   f32
    Zero padding is numerically exact: padded W1 columns give h1_pad = 0, padded
    scale/shift are 0 -> hb_pad = 0 -> leaky(0) = 0 -> no contribution through the
    zero-padded W2 rows; padded output columns are 0 + b2_pad = 0.
    """
    C, H = params["w1"].shape
    O = params["w2"].shape[1]
    H_p = _round_up(H, 128)
    O_p = _round_up(O, 128)
    cdt = jnp.bfloat16 if use_bf16 else jnp.float32

    scale = params["bn_gamma"] * jax.lax.rsqrt(params["bn_var"] + BN_EPS)
    shift = params["b1"] * scale + params["bn_beta"] - params["bn_mean"] * scale

    w1_p = jnp.zeros((C, H_p), cdt).at[:, :H].set(params["w1"].astype(cdt))
    scale_p = jnp.zeros((1, H_p), jnp.float32).at[0, :H].set(scale)
    shift_p = jnp.zeros((1, H_p), jnp.float32).at[0, :H].set(shift)
    w2_p = jnp.zeros((H_p, O_p), cdt).at[:H, :O].set(params["w2"].astype(cdt))
    b2_p = jnp.zeros((1, O_p), jnp.float32).at[0, :O].set(params["b2"])
    return dict(w1=w1_p, scale=scale_p, shift=shift_p, w2=w2_p, b2=b2_p, output_dim=O)


@functools.partial(jax.jit, static_argnames=("block_b", "ew_bf16"))
def _forward_padded(x, w1_p, scale_p, shift_p, w2_p, b2_p, *, block_b=512, ew_bf16=True):
    """x: (B, C) f32 -> (B, O_pad) f32 logits (lane-padded, valid columns [:O])."""
    B, C = x.shape
    H_p, O_p = w2_p.shape
    assert w1_p.shape == (C, H_p)

    bb = _pick_batch_tile(B, block_b)
    grid = (pl.cdiv(B, bb),)

    wsize = jnp.dtype(w1_p.dtype).itemsize

    # Explicit VMEM budget from the real buffer sizes (resident weights are
    # single-buffered; x / out tiles are double-buffered; f32 intermediates).
    weight_bytes = (w1_p.size + w2_p.size) * wsize + (scale_p.size + shift_p.size + b2_p.size) * 4
    stream_bytes = 2 * bb * C * x.dtype.itemsize + 2 * bb * O_p * 4
    interm_bytes = 2 * bb * H_p * 4 + bb * max(C, H_p) * 4
    needed = int(weight_bytes + stream_bytes + interm_bytes)
    vmem_limit = int(min(max(2 * needed, 16 * 2**20), 64 * 2**20))

    cost = pl.CostEstimate(
        flops=2 * B * (C * H_p + H_p * O_p),
        transcendentals=0,
        bytes_accessed=int(B * C * x.dtype.itemsize            # x
                           + (w1_p.size + w2_p.size) * wsize    # weights
                           + (scale_p.size + shift_p.size + b2_p.size) * 4
                           + B * O_p * 4),                      # output
    )

    kernel = functools.partial(
        _classifier_kernel,
        ew_dtype=jnp.bfloat16 if ew_bf16 else jnp.float32)

    resident = dict(pipeline_mode=pl.Buffered(buffer_count=1))  # constant-index operands

    # NOTE: on v7x, for large B prefer pltpu.CORE_PARALLEL on the batch axis (2 TCs);
    # "parallel" is kept here for portability across generations.
    return pl.pallas_call(
        kernel,
        out_shape=jax.ShapeDtypeStruct((B, O_p), jnp.float32),
        grid_spec=pltpu.PrefetchScalarGridSpec(
            num_scalar_prefetch=0,
            grid=grid,
            in_specs=[
                pl.BlockSpec((bb, C), lambda i: (i, 0)),                     # x tile (streamed)
                pl.BlockSpec((C, H_p), lambda i: (0, 0), **resident),        # W1 (resident)
                pl.BlockSpec((1, H_p), lambda i: (0, 0), **resident),        # BN scale (f32)
                pl.BlockSpec((1, H_p), lambda i: (0, 0), **resident),        # BN/bias shift (f32)
                pl.BlockSpec((H_p, O_p), lambda i: (0, 0), **resident),      # W2 (resident)
                pl.BlockSpec((1, O_p), lambda i: (0, 0), **resident),        # b2 (f32)
            ],
            out_specs=pl.BlockSpec((bb, O_p), lambda i: (i, 0)),
        ),
        compiler_params=pltpu.CompilerParams(
            dimension_semantics=("parallel",),
            vmem_limit_bytes=vmem_limit),
        cost_estimate=cost,
    )(x, w1_p, scale_p, shift_p, w2_p, b2_p)


def deeper_classifier_forward(x, prepped, *, block_b=512, ew_bf16=True, slice_output=True):
    """Eval-mode forward.  `prepped` comes from prepare_params() (computed once)."""
    out = _forward_padded(x, prepped["w1"], prepped["scale"], prepped["shift"],
                          prepped["w2"], prepped["b2"],
                          block_b=block_b, ew_bf16=ew_bf16)
    if slice_output:
        # Perf-sensitive callers should pass slice_output=False and read the
        # lane-padded (B, O_pad) buffer downstream — this slice is pure layout
        # cleanup (an extra HBM read+write of the output).
        return out[:, :prepped["output_dim"]]
    return out


def init_params(key, concat_dim, hidden_dim, output_dim):
    """Deterministic synthetic parameters (shapes match the nn.Module)."""
    k1, k2, k3, k4, k5, k6 = jax.random.split(key, 6)
    # nn.Linear weights are (out, in) in PyTorch; stored transposed (in, out) here.
    w1 = jax.random.normal(k1, (concat_dim, hidden_dim), jnp.float32) * 0.05
    b1 = jax.random.normal(k2, (hidden_dim,), jnp.float32) * 0.05
    w2 = jax.random.normal(k3, (hidden_dim, output_dim), jnp.float32) * 0.05
    b2 = jax.random.normal(k4, (output_dim,), jnp.float32) * 0.05
    bn_gamma = 1.0 + 0.1 * jax.random.normal(k5, (hidden_dim,), jnp.float32)
    bn_beta = 0.1 * jax.random.normal(k6, (hidden_dim,), jnp.float32)
    bn_mean = jnp.linspace(-0.1, 0.1, hidden_dim, dtype=jnp.float32)
    bn_var = jnp.linspace(0.5, 1.5, hidden_dim, dtype=jnp.float32)
    return dict(w1=w1, b1=b1, w2=w2, b2=b2,
                bn_gamma=bn_gamma, bn_beta=bn_beta,
                bn_mean=bn_mean, bn_var=bn_var)


def _reference(x, params):
    """Pure-JAX f32 reference of the eval-mode forward."""
    h = jnp.where(x > 0, x, NEG_SLOPE * x)
    h1 = h @ params["w1"] + params["b1"]
    hb = (h1 - params["bn_mean"]) / jnp.sqrt(params["bn_var"] + BN_EPS)
    hb = hb * params["bn_gamma"] + params["bn_beta"]
    h2 = jnp.where(hb > 0, hb, NEG_SLOPE * hb)
    return h2 @ params["w2"] + params["b2"]


if __name__ == "__main__":
    key = jax.random.PRNGKey(0)
    kx, kp = jax.random.split(key)

    batch, concat_dim, hidden_dim, output_dim = 8, 32, 64, 8
    x = jax.random.normal(kx, (batch, concat_dim), jnp.float32)
    params = init_params(kp, concat_dim, hidden_dim, output_dim)
    ref = _reference(x, params)

    # Exact check of the fold/padding algebra: f32 weights, f32 elementwise.
    prepped_f32 = prepare_params(params, use_bf16=False)
    out_f32 = jax.block_until_ready(
        deeper_classifier_forward(x, prepped_f32, ew_bf16=False))
    assert out_f32.shape == (batch, output_dim)
    assert jnp.allclose(out_f32, ref, atol=1e-4, rtol=1e-4), "f32 mismatch vs reference"

    # Performance path (v6e/v7x): bf16 MXU weights + bf16 elementwise, f32 accumulation
    # and f32 BN epilogue (looser tolerance).
    prepped_bf16 = prepare_params(params, use_bf16=True)
    out_bf16 = jax.block_until_ready(
        deeper_classifier_forward(x, prepped_bf16, ew_bf16=True))
    assert out_bf16.shape == (batch, output_dim)
    assert jnp.allclose(out_bf16, ref, atol=5e-2, rtol=5e-2), "bf16 mismatch vs reference"

    print("KERNEL_OK")
</pallas_src>

<mosaic_0001>
module attributes {stable_mosaic.version = 11 : i64} {
  func.func @_classifier_kernel(%arg0: i32, %arg1: memref<8x32xf32, #tpu.memory_space<vmem>>, %arg2: memref<32x128xf32, #tpu.memory_space<vmem>>, %arg3: memref<1x128xf32, #tpu.memory_space<vmem>>, %arg4: memref<1x128xf32, #tpu.memory_space<vmem>>, %arg5: memref<128x128xf32, #tpu.memory_space<vmem>>, %arg6: memref<1x128xf32, #tpu.memory_space<vmem>>, %arg7: memref<8x128xf32, #tpu.memory_space<vmem>>) attributes {dimension_semantics = [#tpu.dimension_semantics<parallel>], iteration_bounds = array<i64: 1>, scalar_prefetch = 0 : i64, scratch_operands = 0 : i64, tpu.core_type = #tpu.core_type<tc>, window_params = [{transform_indices = @transform_0, window_bounds = array<i64: 8, 32>}, {pipeline_mode = #tpu.pipeline_mode<synchronous>, transform_indices = @transform_1, window_bounds = array<i64: 32, 128>}, {pipeline_mode = #tpu.pipeline_mode<synchronous>, transform_indices = @transform_2, window_bounds = array<i64: 1, 128>}, {pipeline_mode = #tpu.pipeline_mode<synchronous>, transform_indices = @transform_3, window_bounds = array<i64: 1, 128>}, {pipeline_mode = #tpu.pipeline_mode<synchronous>, transform_indices = @transform_4, window_bounds = array<i64: 128, 128>}, {pipeline_mode = #tpu.pipeline_mode<synchronous>, transform_indices = @transform_5, window_bounds = array<i64: 1, 128>}, {transform_indices = @transform_6, window_bounds = array<i64: 8, 128>}]} {
    %c0 = arith.constant 0 : index
    %c0_0 = arith.constant 0 : index
    %0 = vector.load %arg1[%c0, %c0_0] : memref<8x32xf32, #tpu.memory_space<vmem>>, vector<8x32xf32>
    %cst = arith.constant 0.000000e+00 : f32
    %1 = vector.broadcast %cst : f32 to vector<8x32xf32>
    %2 = arith.cmpf ogt, %0, %1 : vector<8x32xf32>
    %cst_1 = arith.constant 0.00999999977 : f32
    %3 = vector.broadcast %cst_1 : f32 to vector<8x32xf32>
    %4 = arith.mulf %3, %0 : vector<8x32xf32>
    %5 = arith.select %2, %0, %4 : vector<8x32xi1>, vector<8x32xf32>
    %c0_2 = arith.constant 0 : index
    %c0_3 = arith.constant 0 : index
    %6 = vector.load %arg2[%c0_2, %c0_3] : memref<32x128xf32, #tpu.memory_space<vmem>>, vector<32x128xf32>
    %cst_4 = arith.constant dense<0.000000e+00> : vector<8x128xf32>
    %7 = tpu.matmul %5, %6, %cst_4 {dimension_numbers = #tpu.dot_dimension_numbers<[1], [0], [0], [1], [0, 0, 1, 1], [], []>} : vector<8x32xf32>, vector<32x128xf32>, vector<8x128xf32> -> vector<8x128xf32>
    %c0_5 = arith.constant 0 : index
    %c0_6 = arith.constant 0 : index
    %8 = vector.load %arg3[%c0_5, %c0_6] : memref<1x128xf32, #tpu.memory_space<vmem>>, vector<1x128xf32>
    %9 = vector.broadcast %8 : vector<1x128xf32> to vector<8x128xf32>
    %10 = arith.mulf %7, %9 : vector<8x128xf32>
    %c0_7 = arith.constant 0 : index
    %c0_8 = arith.constant 0 : index
    %11 = vector.load %arg4[%c0_7, %c0_8] : memref<1x128xf32, #tpu.memory_space<vmem>>, vector<1x128xf32>
    %12 = vector.broadcast %11 : vector<1x128xf32> to vector<8x128xf32>
    %13 = arith.addf %10, %12 : vector<8x128xf32>
    %cst_9 = arith.constant 0.000000e+00 : f32
    %14 = vector.broadcast %cst_9 : f32 to vector<8x128xf32>
    %15 = arith.cmpf ogt, %13, %14 : vector<8x128xf32>
    %cst_10 = arith.constant 0.00999999977 : f32
    %16 = vector.broadcast %cst_10 : f32 to vector<8x128xf32>
    %17 = arith.mulf %16, %13 : vector<8x128xf32>
    %18 = arith.select %15, %13, %17 : vector<8x128xi1>, vector<8x128xf32>
    %c0_11 = arith.constant 0 : index
    %c0_12 = arith.constant 0 : index
    %19 = vector.load %arg5[%c0_11, %c0_12] : memref<128x128xf32, #tpu.memory_space<vmem>>, vector<128x128xf32>
    %cst_13 = arith.constant dense<0.000000e+00> : vector<8x128xf32>
    %20 = tpu.matmul %18, %19, %cst_13 {dimension_numbers = #tpu.dot_dimension_numbers<[1], [0], [0], [1], [0, 0, 1, 1], [], []>} : vector<8x128xf32>, vector<128x128xf32>, vector<8x128xf32> -> vector<8x128xf32>
    %c0_14 = arith.constant 0 : index
    %c0_15 = arith.constant 0 : index
    %21 = vector.load %arg6[%c0_14, %c0_15] : memref<1x128xf32, #tpu.memory_space<vmem>>, vector<1x128xf32>
    %22 = vector.broadcast %21 : vector<1x128xf32> to vector<8x128xf32>
    %23 = arith.addf %20, %22 : vector<8x128xf32>
    %c0_16 = arith.constant 0 : index
    %c0_17 = arith.constant 0 : index
    %24 = vector.load %arg7[%c0_16, %c0_17] : memref<8x128xf32, #tpu.memory_space<vmem>>, vector<8x128xf32>
    tpu.vector_store %arg7[%c0_16, %c0_17], %23 {strides = array<i32>} : memref<8x128xf32, #tpu.memory_space<vmem>>, vector<8x128xf32>,
    return
  }
  func.func @transform_0(%arg0: i32) -> (i32, i32) {
    %c0_i32 = arith.constant 0 : i32
    %c0_i32_0 = arith.constant 0 : i32
    return %arg0, %c0_i32 : i32, i32
  }
  func.func @transform_1(%arg0: i32) -> (i32, i32) {
    %c0_i32 = arith.constant 0 : i32
    %c0_i32_0 = arith.constant 0 : i32
    %c0_i32_1 = arith.constant 0 : i32
    return %c0_i32, %c0_i32_0 : i32, i32
  }
  func.func @transform_2(%arg0: i32) -> (i32, i32) {
    %c0_i32 = arith.constant 0 : i32
    %c0_i32_0 = arith.constant 0 : i32
    %c0_i32_1 = arith.constant 0 : i32
    return %c0_i32, %c0_i32_0 : i32, i32
  }
  func.func @transform_3(%arg0: i32) -> (i32, i32) {
    %c0_i32 = arith.constant 0 : i32
    %c0_i32_0 = arith.constant 0 : i32
    %c0_i32_1 = arith.constant 0 : i32
    return %c0_i32, %c0_i32_0 : i32, i32
  }
  func.func @transform_4(%arg0: i32) -> (i32, i32) {
    %c0_i32 = arith.constant 0 : i32
    %c0_i32_0 = arith.constant 0 : i32
    %c0_i32_1 = arith.constant 0 : i32
    return %c0_i32, %c0_i32_0 : i32, i32
  }
  func.func @transform_5(%arg0: i32) -> (i32, i32) {
    %c0_i32 = arith.constant 0 : i32
    %c0_i32_0 = arith.constant 0 : i32
    %c0_i32_1 = arith.constant 0 : i32
    return %c0_i32, %c0_i32_0 : i32, i32
  }
  func.func @transform_6(%arg0: i32) -> (i32, i32) {
    %c0_i32 = arith.constant 0 : i32
    %c0_i32_0 = arith.constant 0 : i32
    return %arg0, %c0_i32 : i32, i32
  }
}

</mosaic_0001>

<llo_original>
// kernel: _forward_padded.1
$region0: #{_forward_padded.1}
  #allocation0 [shape = 'u32[]', space=smem, size = 0x4, offset = 0x4, fixed_abs, tag = 'smem constant byte address 0x4 - core index']
  #allocation1 [shape = 'u32[144,128]{1,0:T(1,128)}', space=vmem, size = 0x12000, scoped, tag = 'internal scratch']
  %s0 = inlined_call_operand.hbm [shape: f32[8,32], index: 0, kind: input, shape index: {}]
  %s1 = inlined_call_operand.hbm [shape: f32[32,128], index: 1, kind: input, shape index: {}]
  %s2 = inlined_call_operand.vmem [shape: f32[1,128], index: 2, kind: input, shape index: {}]
  %s3 = inlined_call_operand.vmem [shape: f32[1,128], index: 3, kind: input, shape index: {}]
  %s4 = inlined_call_operand.hbm [shape: f32[128,128], index: 4, kind: input, shape index: {}]
  %s5 = inlined_call_operand.vmem [shape: f32[1,128], index: 5, kind: input, shape index: {}]
  %s6 = inlined_call_operand.hbm [shape: f32[8,128], index: 6, kind: output, shape index: {}]
  %s7 = sld [smem:[#allocation0]]
  $region46: #{_forward_padded.1} parent=0
    _
  %s9 = ssub.s32 1, %s7
  %s10 = scalar_select 0, %s9, %s7
  $region1: #{_forward_padded.1} parent=0
    #allocation2 [shape = 'u8[4096]{0}', space=vmem, size = 0x1000, scoped, tag = 'input window, operand 0, single buffered']
    #allocation3 [shape = 's32[1]{0}', space=sflag, size = 0x4, scoped, tag = 'scoped memory for _forward_padded.1']
    #allocation4 [shape = 's32[1]{0}', space=sflag, size = 0x4, scoped, tag = 'scoped memory for _forward_padded.1']
    #allocation5 [shape = 'u8[16384]{0}', space=vmem, size = 0x4000, scoped, tag = 'input window, operand 1, single buffered']
    #allocation6 [shape = 's32[1]{0}', space=sflag, size = 0x4, scoped, tag = 'scoped memory for _forward_padded.1']
    #allocation7 [shape = 'u8[65536]{0}', space=vmem, size = 0x10000, scoped, tag = 'input window, operand 4, single buffered']
    #allocation8 [shape = 'u8[4096]{0}', space=vmem, size = 0x1000, scoped, tag = 'output window, operand 0, single buffered']
    %11 = vsyncpa [#allocation3], 0
    %12 = vsyncpa [#allocation6], 0
    %13 = vsyncpa [#allocation4], 0
    // Predicated region
    $region2: #{_forward_padded.1} parent=1 // pred_check
      _
    $region3: #{_forward_padded.1} parent=1 // pred_check_branch
      %15 = sbr.rel (0) target = $region5
    $region4: #{_forward_padded.1} parent=1 // pred_region
      %s17 = ssub.s32 128, 128
      %18 = vsyncadd [#allocation3], %s17
      %s20 = sshll.u32 [#allocation2], 4
      %s21 = int_to_ptr.vmem [resolvable:$true] %s20
      %23 = dma.hbm_to_vmem [thread:$0]  %s0, 128, %s21, [#allocation3]
    $region5: #{_forward_padded.1} parent=1 // pred_fallthru
      _
    // Predicated region
    $region6: #{_forward_padded.1} parent=1 // pred_check
      _
    $region7: #{_forward_padded.1} parent=1 // pred_check_branch
      %25 = sbr.rel (0) target = $region9
    $region8: #{_forward_padded.1} parent=1 // pred_region
      %s27 = ssub.s32 512, 512
      %28 = vsyncadd [#allocation6], %s27
      %s29 = sshll.u32 [#allocation5], 4
      %s30 = int_to_ptr.vmem [resolvable:$true] %s29
      %35 = dma.hbm_to_vmem [thread:$0]  %s1, 512, %s30, [#allocation6], 128, 128, 8
    $region9: #{_forward_padded.1} parent=1 // pred_fallthru
      _
    // Predicated region
    $region10: #{_forward_padded.1} parent=1 // pred_check
      _
    $region11: #{_forward_padded.1} parent=1 // pred_check_branch
      %37 = sbr.rel (0) target = $region13
    $region12: #{_forward_padded.1} parent=1 // pred_region
      _
    $region13: #{_forward_padded.1} parent=1 // pred_fallthru
      _
    // Predicated region
    $region14: #{_forward_padded.1} parent=1 // pred_check
      _
    $region15: #{_forward_padded.1} parent=1 // pred_check_branch
      %39 = sbr.rel (0) target = $region17
    $region16: #{_forward_padded.1} parent=1 // pred_region
      _
    $region17: #{_forward_padded.1} parent=1 // pred_fallthru
      _
    // Predicated region
    $region18: #{_forward_padded.1} parent=1 // pred_check
      _
    $region19: #{_forward_padded.1} parent=1 // pred_check_branch
      %41 = sbr.rel (0) target = $region21
    $region20: #{_forward_padded.1} parent=1 // pred_region
      %s43 = ssub.s32 2048, 2048
      %44 = vsyncadd [#allocation6], %s43
      %s45 = sshll.u32 [#allocation7], 4
      %s46 = int_to_ptr.vmem [resolvable:$true] %s45
      %51 = dma.hbm_to_vmem [thread:$0]  %s4, 2048, %s46, [#allocation6], 128, 128, 8
    $region21: #{_forward_padded.1} parent=1 // pred_fallthru
      _
    // Predicated region
    $region22: #{_forward_padded.1} parent=1 // pred_check
      _
    $region23: #{_forward_padded.1} parent=1 // pred_check_branch
      %53 = sbr.rel (0) target = $region25
    $region24: #{_forward_padded.1} parent=1 // pred_region
      _
    $region25: #{_forward_padded.1} parent=1 // pred_fallthru
      _
    // Predicated region
    $region26: #{_forward_padded.1} parent=1 // pred_check
      _
    $region27: #{_forward_padded.1} parent=1 // pred_check_branch
      %55 = sbr.rel (0) target = $region29
    $region28: #{_forward_padded.1} parent=1 // pred_region
      %56 = dma.done [#allocation3], 128
    $region29: #{_forward_padded.1} parent=1 // pred_fallthru
      _
    // Predicated region
    $region30: #{_forward_padded.1} parent=1 // pred_check
      _
    $region31: #{_forward_padded.1} parent=1 // pred_check_branch
      %58 = sbr.rel (0) target = $region33
    $region32: #{_forward_padded.1} parent=1 // pred_region
      %59 = dma.done [#allocation6], 512
    $region33: #{_forward_padded.1} parent=1 // pred_fallthru
      _
    // Predicated region
    $region34: #{_forward_padded.1} parent=1 // pred_check
      _
    $region35: #{_forward_padded.1} parent=1 // pred_check_branch
      %61 = sbr.rel (0) target = $region37
    $region36: #{_forward_padded.1} parent=1 // pred_region
      %62 = dma.done [#allocation6], 2048
    $region37: #{_forward_padded.1} parent=1 // pred_fallthru
      _
    %v63 = vld [vmem:[#allocation2] sm:$0xff]
    %vm64 = vcmp.gt.f32.partialorder %v63, 0.0
    %v65 = vmul.f32 %v63, 0.01
    %v66 = vsel %vm64, %v63, %v65
    %v67 = vld [vmem:[#allocation5] sm:$0xff]
    %v68 = vld [vmem:[#allocation5 + $0x8] sm:$0xff]
    %v69 = vld [vmem:[#allocation5 + $0x10] sm:$0xff]
    %v70 = vld [vmem:[#allocation5 + $0x18] sm:$0xff]
    %vm71 = vcmask 261120
    %v73 = vsel %vm71, %v66, 0
    %75 = vmatprep.subr.mxu0 0.0
    %76 = vmatpush1.msra.mxu0 %v67
    %77 = vmatprep.subr.mxu0 0.0
    %78 = vmatpush1.msra.mxu0 %v68
    %79 = vmatprep.subr.mxu0 0.0
    %80 = vmatpush1.msra.mxu0 %v69
    %81 = vmatprep.subr.mxu0 0.0
    %82 = vmatpush1.msra.mxu0 %v70
    %83 = vmatprep.subr.mxu0 0.0
    %84 = vmatpush1.msra.mxu0 0.0
    %85 = vmatprep.subr.mxu0 0.0
    %86 = vmatpush1.msra.mxu0 0.0
    %87 = vmatprep.subr.mxu0 0.0
    %88 = vmatpush1.msra.mxu0 0.0
    %89 = vmatprep.subr.mxu0 0.0
    %90 = vmatpush1.msra.mxu0 0.0
    %91 = vmatprep.subr.mxu0 0.0
    %92 = vmatpush1.msra.mxu0 0.0
    %93 = vmatprep.subr.mxu0 0.0
    %94 = vmatpush1.msra.mxu0 0.0
    %95 = vmatprep.subr.mxu0 0.0
    %96 = vmatpush1.msra.mxu0 0.0
    %97 = vmatprep.subr.mxu0 0.0
    %98 = vmatpush1.msra.mxu0 0.0
    %99 = vmatprep.subr.mxu0 0.0
    %100 = vmatpush1.msra.mxu0 0.0
    %101 = vmatprep.subr.mxu0 0.0
    %102 = vmatpush1.msra.mxu0 0.0
    %103 = vmatprep.subr.mxu0 0.0
    %104 = vmatpush1.msra.mxu0 0.0
    %105 = vmatprep.subr.mxu0 0.0
    %106 = vmatpush1.msra.mxu0 0.0
    %107 = vmatprep.subr.mxu0 0.0
    %108 = vmatpush1.msra.mxu0 0.0
    %109 = vmatprep.subr.mxu0 0.0
    %110 = vmatpush1.msra.mxu0 0.0
    %111 = vmatprep.subr.mxu0 0.0
    %112 = vmatpush1.msra.mxu0 0.0
    %113 = vmatprep.subr.mxu0 0.0
    %114 = vmatpush1.msra.mxu0 0.0
    %115 = vmatprep.subr.mxu0 0.0
    %116 = vmatpush1.msra.mxu0 0.0
    %117 = vmatprep.subr.mxu0 0.0
    %118 = vmatpush1.msra.mxu0 0.0
    %119 = vmatprep.subr.mxu0 0.0
    %120 = vmatpush1.msra.mxu0 0.0
    %121 = vmatprep.subr.mxu0 0.0
    %122 = vmatpush1.msra.mxu0 0.0
    %123 = vmatprep.subr.mxu0 0.0
    %124 = vmatpush1.msra.mxu0 0.0
    %125 = vmatprep.subr.mxu0 0.0
    %126 = vmatpush1.msra.mxu0 0.0
    %127 = vmatprep.subr.mxu0 0.0
    %128 = vmatpush1.msra.mxu0 0.0
    %129 = vmatprep.subr.mxu0 0.0
    %130 = vmatpush1.msra.mxu0 0.0
    %131 = vmatprep.subr.mxu0 0.0
    %132 = vmatpush1.msra.mxu0 0.0
    %133 = vmatprep.subr.mxu0 0.0
    %134 = vmatpush1.msra.mxu0 0.0
    %135 = vmatprep.subr.mxu0 0.0
    %136 = vmatpush1.msra.mxu0 0.0
    %137 = vmatprep.subr.mxu0 0.0
    %138 = vmatpush1.msra.mxu0 0.0
    %139 = vmatprep.mubr.f32.mxu0 0.0
    %140 = vmatmul.mubr.f32.gmra.mrb[0].mxu0 %v73
    %v141 = vpop.f32.mrb[0].mxu0
    %v142 = vadd.f32 0.0, %v141
    %v143 = vpop.f32.mrb[0].mxu0
    %144 = vdwg.mxu0
    %v145 = vld [vmem:[%s2] sm:$0x1]
    %v147 = vlaneseq
    %v148 = vshrl.u32 %v147, 7
    %v149 = vsub.s32 0, %v148
    %v150 = vrot.slane %v145, %v149
    %v152 = vmul.f32 %v142, %v150
    %v153 = vld [vmem:[%s3] sm:$0x1]
    %v155 = vlaneseq
    %v156 = vshrl.u32 %v155, 7
    %v157 = vsub.s32 0, %v156
    %v158 = vrot.slane %v153, %v157
    %v160 = vadd.f32 %v152, %v158
    %vm161 = vcmp.gt.f32.partialorder %v160, 0.0
    %v162 = vmul.f32 %v160, 0.01
    %v163 = vsel %vm161, %v160, %v162
    %v164 = vld [vmem:[#allocation7] sm:$0xff]
    %v165 = vld [vmem:[#allocation7 + $0x8] sm:$0xff]
    %v166 = vld [vmem:[#allocation7 + $0x10] sm:$0xff]
    %v167 = vld [vmem:[#allocation7 + $0x18] sm:$0xff]
    %v168 = vld [vmem:[#allocation7 + $0x20] sm:$0xff]
    %v169 = vld [vmem:[#allocation7 + $0x28] sm:$0xff]
    %v170 = vld [vmem:[#allocation7 + $0x30] sm:$0xff]
    %v171 = vld [vmem:[#allocation7 + $0x38] sm:$0xff]
    %v172 = vld [vmem:[#allocation7 + $0x40] sm:$0xff]
    %v173 = vld [vmem:[#allocation7 + $0x48] sm:$0xff]
    %v174 = vld [vmem:[#allocation7 + $0x50] sm:$0xff]
    %v175 = vld [vmem:[#allocation7 + $0x58] sm:$0xff]
    %v176 = vld [vmem:[#allocation7 + $0x60] sm:$0xff]
    %v177 = vld [vmem:[#allocation7 + $0x68] sm:$0xff]
    %v178 = vld [vmem:[#allocation7 + $0x70] sm:$0xff]
    %v179 = vld [vmem:[#allocation7 + $0x78] sm:$0xff]
    %v180 = vld [vmem:[%s5] sm:$0x1]
    %v182 = vlaneseq
    %v183 = vshrl.u32 %v182, 7
    %v184 = vsub.s32 0, %v183
    %v185 = vrot.slane %v180, %v184
    %187 = vmatprep.subr.mxu0 0.0
    %188 = vmatpush1.msra.mxu0 %v164
    %189 = vmatprep.subr.mxu0 0.0
    %190 = vmatpush1.msra.mxu0 %v165
    %191 = vmatprep.subr.mxu0 0.0
    %192 = vmatpush1.msra.mxu0 %v166
    %193 = vmatprep.subr.mxu0 0.0
    %194 = vmatpush1.msra.mxu0 %v167
    %195 = vmatprep.subr.mxu0 0.0
    %196 = vmatpush1.msra.mxu0 %v168
    %197 = vmatprep.subr.mxu0 0.0
    %198 = vmatpush1.msra.mxu0 %v169
    %199 = vmatprep.subr.mxu0 0.0
    %200 = vmatpush1.msra.mxu0 %v170
    %201 = vmatprep.subr.mxu0 0.0
    %202 = vmatpush1.msra.mxu0 %v171
    %203 = vmatprep.subr.mxu0 0.0
    %204 = vmatpush1.msra.mxu0 %v172
    %205 = vmatprep.subr.mxu0 0.0
    %206 = vmatpush1.msra.mxu0 %v173
    %207 = vmatprep.subr.mxu0 0.0
    %208 = vmatpush1.msra.mxu0 %v174
    %209 = vmatprep.subr.mxu0 0.0
    %210 = vmatpush1.msra.mxu0 %v175
    %211 = vmatprep.subr.mxu0 0.0
    %212 = vmatpush1.msra.mxu0 %v176
    %213 = vmatprep.subr.mxu0 0.0
    %214 = vmatpush1.msra.mxu0 %v177
    %215 = vmatprep.subr.mxu0 0.0
    %216 = vmatpush1.msra.mxu0 %v178
    %217 = vmatprep.subr.mxu0 0.0
    %218 = vmatpush1.msra.mxu0 %v179
    %219 = vmatprep.subr.mxu0 0.0
    %220 = vmatpush1.msra.mxu0 0.0
    %221 = vmatprep.subr.mxu0 0.0
    %222 = vmatpush1.msra.mxu0 0.0
    %223 = vmatprep.subr.mxu0 0.0
    %224 = vmatpush1.msra.mxu0 0.0
    %225 = vmatprep.subr.mxu0 0.0
    %226 = vmatpush1.msra.mxu0 0.0
    %227 = vmatprep.subr.mxu0 0.0
    %228 = vmatpush1.msra.mxu0 0.0
    %229 = vmatprep.subr.mxu0 0.0
    %230 = vmatpush1.msra.mxu0 0.0
    %231 = vmatprep.subr.mxu0 0.0
    %232 = vmatpush1.msra.mxu0 0.0
    %233 = vmatprep.subr.mxu0 0.0
    %234 = vmatpush1.msra.mxu0 0.0
    %235 = vmatprep.subr.mxu0 0.0
    %236 = vmatpush1.msra.mxu0 0.0
    %237 = vmatprep.subr.mxu0 0.0
    %238 = vmatpush1.msra.mxu0 0.0
    %239 = vmatprep.subr.mxu0 0.0
    %240 = vmatpush1.msra.mxu0 0.0
    %241 = vmatprep.subr.mxu0 0.0
    %242 = vmatpush1.msra.mxu0 0.0
    %243 = vmatprep.subr.mxu0 0.0
    %244 = vmatpush1.msra.mxu0 0.0
    %245 = vmatprep.subr.mxu0 0.0
    %246 = vmatpush1.msra.mxu0 0.0
    %247 = vmatprep.subr.mxu0 0.0
    %248 = vmatpush1.msra.mxu0 0.0
    %249 = vmatprep.subr.mxu0 0.0
    %250 = vmatpush1.msra.mxu0 0.0
    %251 = vmatprep.mubr.f32.mxu0 0.0
    %252 = vmatmul.mubr.f32.gmra.mrb[0].mxu0 %v163
    %v253 = vpop.f32.mrb[0].mxu0
    %v254 = vadd.f32 %v185, %v253
    %v255 = vpop.f32.mrb[0].mxu0
    %256 = vdwg.mxu0
    %257 = vst [vmem:[#allocation8] sm:$0xff] %v254
    // Predicated region
    $region38: #{_forward_padded.1} parent=1 // pred_check
      _
    $region39: #{_forward_padded.1} parent=1 // pred_check_branch
      %259 = sbr.rel (0) target = $region41
    $region40: #{_forward_padded.1} parent=1 // pred_region
      %s261 = ssub.s32 128, 128
      %262 = vsyncadd [#allocation4], %s261
      %s264 = sshll.u32 [#allocation8], 4
      %s265 = int_to_ptr.vmem [resolvable:$true] %s264
      %267 = dma.vmem_to_hbm [thread:$0]  %s265, 128, %s6, [#allocation4]
    $region41: #{_forward_padded.1} parent=1 // pred_fallthru
      _
    // Predicated region
    $region42: #{_forward_padded.1} parent=1 // pred_check
      _
    $region43: #{_forward_padded.1} parent=1 // pred_check_branch
      %269 = sbr.rel (0) target = $region45
    $region44: #{_forward_padded.1} parent=1 // pred_region
      %270 = dma.done [#allocation4], 128
    $region45: #{_forward_padded.1} parent=1 // pred_fallthru
      _
    %271 = vsyncpa [#allocation3], 1
    %272 = vsyncpa [#allocation6], 1
    %273 = vsyncpa [#allocation4], 1

</llo_original>
